<compile_context>
chip_gen: v7x
topology: tpu7x:2x2x1
jax: 0.10.0
libtpu: 0.0.40
codegen_flags: <defaults>
</compile_context>

<pallas_src>
import functools

import jax
import jax.numpy as jnp
from jax.experimental import pallas as pl
from jax.experimental.pallas import tpu as pltpu


def _transition_kernel(x_ref, scale_ref, bias_ref, w_ref, o_ref, *, mxu_dtype):
    # x_ref:     (2, 2, 2, HW_tile, C_in)  -- (w-parity, h-parity, d-parity, Ho*Wo tile, C)
    # scale_ref: (1, C_in)                 -- folded BN scale
    # bias_ref:  (1, C_in)                 -- folded BN bias
    # w_ref:     (C_in, C_out)             -- 1x1x1 conv weight (x 1/8 for the avg pool)
    # o_ref:     (HW_tile, C_out)
    _, _, _, hw_t, c_in = x_ref.shape
    x = x_ref[...].reshape(8, hw_t, c_in)          # merge leading size-2 axes (layout-free)
    scale = scale_ref[0]                           # (C_in,)
    bias = bias_ref[0]                             # (C_in,)

    # BatchNorm (folded) + ReLU, then 2x2x2 sum-pool over the leading window axis.
    z = jnp.maximum(x * scale + bias, 0.0)
    pooled = z.sum(axis=0)                         # (HW_tile, C_in); 1/8 lives in w_ref

    # 1x1x1 conv == channel matmul on the MXU; lane-dense (HW_tile, C_out) store.
    o_ref[...] = jnp.dot(pooled.astype(mxu_dtype), w_ref[...],
                         preferred_element_type=jnp.float32).astype(o_ref.dtype)


def _pick_hw_tile(hw, c_in, budget_bytes, itemsize=4):
    """Largest divisor of hw (multiple of 8, or hw itself) whose 2x2x2 input block fits budget."""
    cands = [t for t in range(1, hw + 1) if hw % t == 0 and (t % 8 == 0 or t == hw)]
    fitting = [t for t in cands if 8 * t * c_in * itemsize <= budget_bytes]
    return max(fitting) if fitting else min(cands)


@functools.partial(jax.jit, static_argnames=("eps", "block_budget_bytes", "mxu_dtype"))
def transition_layer_3d(x, gamma, beta, conv_w, eps=1e-5,
                        block_budget_bytes=4 * 1024 * 1024,
                        mxu_dtype=jnp.float32):
    """x: (N, C_in, D, H, W) f32.  conv_w: (C_out, C_in).  Returns (N, C_out, D//2, H//2, W//2)."""
    n, c_in, d, h, w = x.shape
    c_out = conv_w.shape[0]
    do, ho, wo = d // 2, h // 2, w // 2
    # AvgPool3d(kernel=2, stride=2) floors odd spatial dims; crop to match PyTorch.
    x = x[:, :, : 2 * do, : 2 * ho, : 2 * wo]

    # ---- glue: BatchNorm3d training-mode batch statistics, folded into scale/bias.
    mean = jnp.mean(x, axis=(0, 2, 3, 4))
    var = jnp.var(x, axis=(0, 2, 3, 4))            # biased variance (BN normalization)
    scale = (gamma / jnp.sqrt(var + eps)).astype(jnp.float32)
    bias = (beta - mean * scale).astype(jnp.float32)
    scale2 = scale.reshape(1, c_in)
    bias2 = bias.reshape(1, c_in)
    # Conv weight transposed for (HW, C_in) @ (C_in, C_out); 1/8 avg-pool factor folded in.
    w_mat = (conv_w.reshape(c_out, c_in).T * 0.125).astype(mxu_dtype)

    # ---- glue: SINGLE transpose pass exposing all pool-parity axes as major dims.
    #      xg[n, wp, hp, dd, ho*Wo + wo, c] = x[n, c, dd, 2*ho + hp, 2*wo + wp]
    xg = x.reshape(n, c_in, 2 * do, ho, 2, wo, 2)
    xg = jnp.transpose(xg, (0, 6, 4, 2, 3, 5, 1))          # (N, Wp, Hp, D, Ho, Wo, C)
    xg = xg.reshape(n, 2, 2, 2 * do, ho * wo, c_in)        # free reshape

    hw = ho * wo
    hw_tile = _pick_hw_tile(hw, c_in, block_budget_bytes)
    n_hw = hw // hw_tile

    x_block_bytes = 8 * hw_tile * c_in * 4
    o_block_bytes = hw_tile * c_out * 4
    param_bytes = (c_in * c_out + 2 * c_in) * 4
    # 2 input buffers + f32 temporaries + 2 output buffers + double-buffered params + margin.
    vmem_limit = int(min(max(6 * x_block_bytes + 4 * o_block_bytes + 8 * param_bytes
                             + (4 << 20), 32 << 20), 96 << 20))

    flops = 2 * n * do * hw * c_in * c_out + 4 * n * (2 * do) * (2 * ho) * (2 * wo) * c_in
    bytes_accessed = (xg.size * xg.dtype.itemsize + n * do * hw * c_out * 4 + param_bytes)
    cost = pl.CostEstimate(flops=flops, transcendentals=0, bytes_accessed=bytes_accessed)

    kernel = functools.partial(_transition_kernel, mxu_dtype=mxu_dtype)

    out = pl.pallas_call(
        kernel,
        out_shape=jax.ShapeDtypeStruct((n, do, hw, c_out), jnp.float32),
        grid_spec=pltpu.PrefetchScalarGridSpec(
            num_scalar_prefetch=0,
            grid=(n, do, n_hw),
            in_specs=[
                pl.BlockSpec((pl.Squeezed(), 2, 2, 2, hw_tile, c_in),
                             lambda ni, di, hi: (ni, 0, 0, di, hi, 0)),
                pl.BlockSpec((1, c_in), lambda ni, di, hi: (0, 0)),
                pl.BlockSpec((1, c_in), lambda ni, di, hi: (0, 0)),
                # TODO(synk): for large C_in*C_out weights, load once into VMEM scratch
                # (or pipeline_mode=pl.Buffered(1)) to reclaim the second resident buffer.
                pl.BlockSpec((c_in, c_out), lambda ni, di, hi: (0, 0)),
            ],
            out_specs=pl.BlockSpec((pl.Squeezed(), pl.Squeezed(), hw_tile, c_out),
                                   lambda ni, di, hi: (ni, di, hi, 0)),
        ),
        compiler_params=pltpu.CompilerParams(
            dimension_semantics=("parallel", "parallel", "parallel"),
            vmem_limit_bytes=vmem_limit),
        cost_estimate=cost,
    )(xg, scale2, bias2, w_mat)

    # ---- glue: back to NCDHW (single transpose pass).
    out = out.reshape(n, do, ho, wo, c_out)
    return jnp.transpose(out, (0, 4, 1, 2, 3))


def _reference(x, gamma, beta, conv_w, eps=1e-5):
    """Pure-JAX mirror of the PyTorch module (training-mode BN, 1x1x1 conv, avgpool 2)."""
    mean = jnp.mean(x, axis=(0, 2, 3, 4), keepdims=True)
    var = jnp.var(x, axis=(0, 2, 3, 4), keepdims=True)
    g = gamma.reshape(1, -1, 1, 1, 1)
    b = beta.reshape(1, -1, 1, 1, 1)
    z = jnp.maximum((x - mean) / jnp.sqrt(var + eps) * g + b, 0.0)
    y = jnp.einsum("ncdhw,oc->nodhw", z, conv_w)
    n, co, d, h, w = y.shape
    y = y.reshape(n, co, d // 2, 2, h // 2, 2, w // 2, 2)
    return y.mean(axis=(3, 5, 7))


if __name__ == "__main__":
    key = jax.random.PRNGKey(0)
    k_x, k_g, k_b, k_w = jax.random.split(key, 4)

    N, C_IN, C_OUT = 2, 8, 4
    D, H, W = 4, 8, 8

    x = jax.random.normal(k_x, (N, C_IN, D, H, W), dtype=jnp.float32)
    gamma = jax.random.normal(k_g, (C_IN,), dtype=jnp.float32) * 0.1 + 1.0
    beta = jax.random.normal(k_b, (C_IN,), dtype=jnp.float32) * 0.1
    conv_w = jax.random.normal(k_w, (C_OUT, C_IN), dtype=jnp.float32) * 0.1

    out = jax.block_until_ready(transition_layer_3d(x, gamma, beta, conv_w))
    ref = jax.block_until_ready(_reference(x, gamma, beta, conv_w))

    assert out.shape == (N, C_OUT, D // 2, H // 2, W // 2), out.shape
    assert jnp.allclose(out, ref, rtol=1e-4, atol=1e-4), float(jnp.max(jnp.abs(out - ref)))
    print("KERNEL_OK")
</pallas_src>

<mosaic_0001>
module attributes {stable_mosaic.version = 11 : i64} {
  func.func @_transition_kernel(%arg0: i32, %arg1: i32, %arg2: i32, %arg3: memref<1x2x2x2x16x8xf32, #tpu.memory_space<vmem>>, %arg4: memref<1x8xf32, #tpu.memory_space<vmem>>, %arg5: memref<1x8xf32, #tpu.memory_space<vmem>>, %arg6: memref<8x4xf32, #tpu.memory_space<vmem>>, %arg7: memref<1x1x16x4xf32, #tpu.memory_space<vmem>>) attributes {dimension_semantics = [#tpu.dimension_semantics<parallel>, #tpu.dimension_semantics<parallel>, #tpu.dimension_semantics<parallel>], iteration_bounds = array<i64: 2, 2, 1>, scalar_prefetch = 0 : i64, scratch_operands = 0 : i64, tpu.core_type = #tpu.core_type<tc>, window_params = [{transform_indices = @transform_0, window_bounds = array<i64: 1, 2, 2, 2, 16, 8>}, {pipeline_mode = #tpu.pipeline_mode<synchronous>, transform_indices = @transform_1, window_bounds = array<i64: 1, 8>}, {pipeline_mode = #tpu.pipeline_mode<synchronous>, transform_indices = @transform_2, window_bounds = array<i64: 1, 8>}, {pipeline_mode = #tpu.pipeline_mode<synchronous>, transform_indices = @transform_3, window_bounds = array<i64: 8, 4>}, {transform_indices = @transform_4, window_bounds = array<i64: 1, 1, 16, 4>}]} {
    %c0 = arith.constant 0 : index
    %c0_0 = arith.constant 0 : index
    %c0_1 = arith.constant 0 : index
    %c0_2 = arith.constant 0 : index
    %c0_3 = arith.constant 0 : index
    %c0_4 = arith.constant 0 : index
    %0 = vector.load %arg3[%c0, %c0_0, %c0_1, %c0_2, %c0_3, %c0_4] : memref<1x2x2x2x16x8xf32, #tpu.memory_space<vmem>>, vector<1x2x2x2x16x8xf32>
    %1 = vector.shape_cast %0 : vector<1x2x2x2x16x8xf32> to vector<2x2x2x16x8xf32>
    %2 = vector.shape_cast %1 : vector<2x2x2x16x8xf32> to vector<8x16x8xf32>
    %c0_5 = arith.constant 0 : index
    %c0_6 = arith.constant 0 : index
    %3 = vector.load %arg4[%c0_5, %c0_6] : memref<1x8xf32, #tpu.memory_space<vmem>>, vector<1x8xf32>
    %4 = vector.shape_cast %3 : vector<1x8xf32> to vector<8xf32>
    %c0_7 = arith.constant 0 : index
    %c0_8 = arith.constant 0 : index
    %5 = vector.load %arg5[%c0_7, %c0_8] : memref<1x8xf32, #tpu.memory_space<vmem>>, vector<1x8xf32>
    %6 = vector.shape_cast %5 : vector<1x8xf32> to vector<8xf32>
    %7 = vector.shape_cast %4 : vector<8xf32> to vector<1x1x8xf32>
    %8 = vector.broadcast %7 : vector<1x1x8xf32> to vector<8x16x8xf32>
    %9 = arith.mulf %2, %8 : vector<8x16x8xf32>
    %10 = vector.shape_cast %6 : vector<8xf32> to vector<1x1x8xf32>
    %11 = vector.broadcast %10 : vector<1x1x8xf32> to vector<8x16x8xf32>
    %12 = arith.addf %9, %11 : vector<8x16x8xf32>
    %cst = arith.constant 0.000000e+00 : f32
    %13 = vector.broadcast %cst : f32 to vector<8x16x8xf32>
    %14 = arith.maximumf %12, %13 : vector<8x16x8xf32>
    %cst_9 = arith.constant dense<0.000000e+00> : vector<16x8xf32>
    %15 = vector.multi_reduction <add>, %14, %cst_9 [0] : vector<8x16x8xf32> to vector<16x8xf32>
    %c0_10 = arith.constant 0 : index
    %c0_11 = arith.constant 0 : index
    %16 = vector.load %arg6[%c0_10, %c0_11] : memref<8x4xf32, #tpu.memory_space<vmem>>, vector<8x4xf32>
    %cst_12 = arith.constant dense<0.000000e+00> : vector<16x4xf32>
    %17 = tpu.matmul %15, %16, %cst_12 {dimension_numbers = #tpu.dot_dimension_numbers<[1], [0], [0], [1], [0, 0, 1, 1], [], []>} : vector<16x8xf32>, vector<8x4xf32>, vector<16x4xf32> -> vector<16x4xf32>
    %c0_13 = arith.constant 0 : index
    %c0_14 = arith.constant 0 : index
    %c0_15 = arith.constant 0 : index
    %c0_16 = arith.constant 0 : index
    %18 = vector.load %arg7[%c0_13, %c0_14, %c0_15, %c0_16] : memref<1x1x16x4xf32, #tpu.memory_space<vmem>>, vector<1x1x16x4xf32>
    %19 = vector.shape_cast %18 : vector<1x1x16x4xf32> to vector<16x4xf32>
    %20 = vector.shape_cast %17 : vector<16x4xf32> to vector<1x1x16x4xf32>
    tpu.vector_store %arg7[%c0_13, %c0_14, %c0_15, %c0_16], %20 {strides = array<i32>} : memref<1x1x16x4xf32, #tpu.memory_space<vmem>>, vector<1x1x16x4xf32>,
    return
  }
  func.func @transform_0(%arg0: i32, %arg1: i32, %arg2: i32) -> (i32, i32, i32, i32, i32, i32) {
    %c0_i32 = arith.constant 0 : i32
    %c0_i32_0 = arith.constant 0 : i32
    %c0_i32_1 = arith.constant 0 : i32
    %c0_i32_2 = arith.constant 0 : i32
    return %arg0, %c0_i32, %c0_i32_0, %arg1, %arg2, %c0_i32_1 : i32, i32, i32, i32, i32, i32
  }
  func.func @transform_1(%arg0: i32, %arg1: i32, %arg2: i32) -> (i32, i32) {
    %c0_i32 = arith.constant 0 : i32
    %c0_i32_0 = arith.constant 0 : i32
    %c0_i32_1 = arith.constant 0 : i32
    return %c0_i32, %c0_i32_0 : i32, i32
  }
  func.func @transform_2(%arg0: i32, %arg1: i32, %arg2: i32) -> (i32, i32) {
    %c0_i32 = arith.constant 0 : i32
    %c0_i32_0 = arith.constant 0 : i32
    %c0_i32_1 = arith.constant 0 : i32
    return %c0_i32, %c0_i32_0 : i32, i32
  }
  func.func @transform_3(%arg0: i32, %arg1: i32, %arg2: i32) -> (i32, i32) {
    %c0_i32 = arith.constant 0 : i32
    %c0_i32_0 = arith.constant 0 : i32
    %c0_i32_1 = arith.constant 0 : i32
    return %c0_i32, %c0_i32_0 : i32, i32
  }
  func.func @transform_4(%arg0: i32, %arg1: i32, %arg2: i32) -> (i32, i32, i32, i32) {
    %c0_i32 = arith.constant 0 : i32
    %c0_i32_0 = arith.constant 0 : i32
    return %arg0, %arg1, %arg2, %c0_i32 : i32, i32, i32, i32
  }
}

</mosaic_0001>

<llo_original>
// kernel: transition_layer_3d.1
$region0: #{transition_layer_3d.1}
  #allocation0 [shape = 'u32[]', space=smem, size = 0x4, offset = 0x4, fixed_abs, tag = 'smem constant byte address 0x4 - core index']
  #allocation1 [shape = 'u32[144,128]{1,0:T(1,128)}', space=vmem, size = 0x12000, scoped, tag = 'internal scratch']
  %s0 = inlined_call_operand.vmem [shape: f32[2,2,2,4,16,8], index: 0, kind: input, shape index: {}]
  %s1 = inlined_call_operand.vmem [shape: f32[1,8], index: 1, kind: input, shape index: {}]
  %s2 = inlined_call_operand.vmem [shape: f32[1,8], index: 2, kind: input, shape index: {}]
  %s3 = inlined_call_operand.vmem [shape: f32[8,4], index: 3, kind: input, shape index: {}]
  %s4 = inlined_call_operand.vmem [shape: f32[2,2,16,4], index: 4, kind: output, shape index: {}]
  %s5 = sld [smem:[#allocation0]]
  $region87: #{transition_layer_3d.1} parent=0
    _
  %s7 = ssub.s32 1, %s5
  %s8 = scalar_select 0, %s7, %s5
  $region1: #{transition_layer_3d.1} parent=0
    #allocation2 [shape = 'u8[131072]{0}', space=vmem, size = 0x20000, scoped, tag = 'input window, operand 0']
    loop: start=0, step=1, limit=6
    $region2: #{transition_layer_3d.1} parent=1 // loop_pre_header
      _
    $region3: #{transition_layer_3d.1} parent=1 // loop_header
      %s10 = sphi 0, %s14
      %p11 = scmp.ge.s32.totalorder %s10, 6
      %s17 = sphi 0, %s36
      %s18 = sphi 0, %s32
      %s19 = sphi 0, %s28
      %s20 = sphi 0, %s17
      %s21 = sphi 0, %s18
      %s22 = sphi 0, %s19
      %s23 = sphi 0, %s20
      %s24 = sphi 0, %s21
      %s25 = sphi 0, %s22
      %s43 = sphi 0, %s45
      %s46 = sphi 0, %s43
      %s47 = sphi 0, %s46
      %s63 = sphi 0, %s47
      %s67 = sphi 0, %s67
      %s69 = sphi 0, %s67
      %s70 = sphi 0, %s69
      %s84 = sphi 0, %s70
      %s88 = sphi 0, %s88
      %s90 = sphi 0, %s88
      %s91 = sphi 0, %s90
      %s105 = sphi 0, %s91
      %s109 = sphi 0, %s109
      %s111 = sphi 0, %s109
      %s112 = sphi 0, %s111
      %s126 = sphi 0, %s112
      %s136 = sphi 0, %s138
      %s139 = sphi 0, %s136
      %s140 = sphi 0, %s139
      %s156 = sphi 0, %s140
    $region4: #{transition_layer_3d.1} parent=1 // loop_header_branch
      %13 = sbr.rel (%p11) target = $region8
    $region5: #{transition_layer_3d.1} parent=1 // loop_body
      %s15 = ssub.s32 %s10, 1
      %s16 = ssub.s32 %s10, 2
      %s26 = sadd.s32 1, %s19
      %p27 = scmp.ge.s32.totalorder %s26, 1
      %s28 = scalar_select %p27, 0, %s26
      %s29 = sadd.s32 1, %s18
      %s30 = scalar_select %p27, %s29, %s18
      %p31 = scmp.ge.s32.totalorder %s30, 2
      %s32 = scalar_select %p31, 0, %s30
      %s33 = sadd.s32 1, %s17
      %s34 = scalar_select %p31, %s33, %s17
      %p35 = scmp.ge.s32.totalorder %s34, 2
      %s36 = scalar_select %p35, 0, %s34
      %s37 = ssub.s32 %s17, %s36
      %s38 = ssub.s32 %s18, %s32
      %s39 = sor.u32 %s37, %s38
      %s40 = ssub.s32 %s19, %s28
      %s41 = sor.u32 %s39, %s40
      %p42 = scmp.eq.s32.totalorder %s41, 0
      %s44 = sadd.s32 %s43, 1
      %s45 = scalar_select %p42, %s43, %s44
      %p48 = pneg %p42
      %p49 = scmp.eq.s32.totalorder %s10, 3
      %p50 = por %p48, %p49
      %p51 = scmp.ne.s32.totalorder %s43, %s46
      %p52 = scmp.eq.s32.totalorder %s10, 0
      %p53 = por %p51, %p52
      %p54 = scmp.ne.s32.totalorder %s43, %s46
      %p55 = scmp.eq.s32.totalorder %s15, 3
      %p56 = por %p54, %p55
      %p57 = scmp.ne.s32.totalorder %s46, %s47
      %p58 = scmp.eq.s32.totalorder %s15, 0
      %p59 = por %p57, %p58
      %p60 = scmp.ne.s32.totalorder %s46, %s47
      %p61 = scmp.eq.s32.totalorder %s16, 3
      %p62 = por %p60, %p61
      %p64 = scmp.ne.s32.totalorder %s47, %s63
      %p65 = scmp.eq.s32.totalorder %s16, 0
      %p66 = por %p64, %p65
      %s68 = sadd.s32 %s67, 1
      %p71 = scmp.eq.s32.totalorder %s10, 3
      %p72 = scmp.ne.s32.totalorder %s67, %s69
      %p73 = scmp.eq.s32.totalorder %s10, 0
      %p74 = por %p72, %p73
      %p75 = scmp.ne.s32.totalorder %s67, %s69
      %p76 = scmp.eq.s32.totalorder %s15, 3
      %p77 = por %p75, %p76
      %p78 = scmp.ne.s32.totalorder %s69, %s70
      %p79 = scmp.eq.s32.totalorder %s15, 0
      %p80 = por %p78, %p79
      %p81 = scmp.ne.s32.totalorder %s69, %s70
      %p82 = scmp.eq.s32.totalorder %s16, 3
      %p83 = por %p81, %p82
      %p85 = scmp.ne.s32.totalorder %s70, %s84
      %p86 = scmp.eq.s32.totalorder %s16, 0
      %p87 = por %p85, %p86
      %s89 = sadd.s32 %s88, 1
      %p92 = scmp.eq.s32.totalorder %s10, 3
      %p93 = scmp.ne.s32.totalorder %s88, %s90
      %p94 = scmp.eq.s32.totalorder %s10, 0
      %p95 = por %p93, %p94
      %p96 = scmp.ne.s32.totalorder %s88, %s90
      %p97 = scmp.eq.s32.totalorder %s15, 3
      %p98 = por %p96, %p97
      %p99 = scmp.ne.s32.totalorder %s90, %s91
      %p100 = scmp.eq.s32.totalorder %s15, 0
      %p101 = por %p99, %p100
      %p102 = scmp.ne.s32.totalorder %s90, %s91
      %p103 = scmp.eq.s32.totalorder %s16, 3
      %p104 = por %p102, %p103
      %p106 = scmp.ne.s32.totalorder %s91, %s105
      %p107 = scmp.eq.s32.totalorder %s16, 0
      %p108 = por %p106, %p107
      %s110 = sadd.s32 %s109, 1
      %p113 = scmp.eq.s32.totalorder %s10, 3
      %p114 = scmp.ne.s32.totalorder %s109, %s111
      %p115 = scmp.eq.s32.totalorder %s10, 0
      %p116 = por %p114, %p115
      %p117 = scmp.ne.s32.totalorder %s109, %s111
      %p118 = scmp.eq.s32.totalorder %s15, 3
      %p119 = por %p117, %p118
      %p120 = scmp.ne.s32.totalorder %s111, %s112
      %p121 = scmp.eq.s32.totalorder %s15, 0
      %p122 = por %p120, %p121
      %p123 = scmp.ne.s32.totalorder %s111, %s112
      %p124 = scmp.eq.s32.totalorder %s16, 3
      %p125 = por %p123, %p124
      %p127 = scmp.ne.s32.totalorder %s112, %s126
      %p128 = scmp.eq.s32.totalorder %s16, 0
      %p129 = por %p127, %p128
      %s130 = ssub.s32 %s17, %s36
      %s131 = ssub.s32 %s18, %s32
      %s132 = sor.u32 %s130, %s131
      %s133 = ssub.s32 %s19, %s28
      %s134 = sor.u32 %s132, %s133
      %p135 = scmp.eq.s32.totalorder %s134, 0
      %s137 = sadd.s32 %s136, 1
      %s138 = scalar_select %p135, %s136, %s137
      %p141 = pneg %p135
      %p142 = scmp.eq.s32.totalorder %s10, 3
      %p143 = por %p141, %p142
      %p144 = scmp.ne.s32.totalorder %s136, %s139
      %p145 = scmp.eq.s32.totalorder %s10, 0
      %p146 = por %p144, %p145
      %p147 = scmp.ne.s32.totalorder %s136, %s139
      %p148 = scmp.eq.s32.totalorder %s15, 3
      %p149 = por %p147, %p148
      %p150 = scmp.ne.s32.totalorder %s139, %s140
      %p151 = scmp.eq.s32.totalorder %s15, 0
      %p152 = por %p150, %p151
      %p153 = scmp.ne.s32.totalorder %s139, %s140
      %p154 = scmp.eq.s32.totalorder %s16, 3
      %p155 = por %p153, %p154
      %p157 = scmp.ne.s32.totalorder %s140, %s156
      %p158 = scmp.eq.s32.totalorder %s16, 0
      %p159 = por %p157, %p158
      %p160 = scmp.le.s32.totalorder 1, %s10
      %p161 = scmp.lt.s32.totalorder %s10, 5
      %p162 = pnand %p160, %p161
      %p163 = pneg %p162
      // Predicated region
      $region9: #{transition_layer_3d.1} parent=5 // pred_check
        _
      $region10: #{transition_layer_3d.1} parent=5 // pred_check_branch
        %165 = sbr.rel (%p162) target = $region12
      $region11: #{transition_layer_3d.1} parent=5 // pred_region
        %s166 = ssub.s32 %s10, 1
        // Predicated region
        $region13: #{transition_layer_3d.1} parent=11 // pred_check
          %p167 = pneg %p80
        $region14: #{transition_layer_3d.1} parent=11 // pred_check_branch
          %169 = sbr.rel (%p167) target = $region16
        $region15: #{transition_layer_3d.1} parent=11 // pred_region
          _
        $region16: #{transition_layer_3d.1} parent=11 // pred_fallthru
          _
        // Predicated region
        $region17: #{transition_layer_3d.1} parent=11 // pred_check
          %p170 = pneg %p101
        $region18: #{transition_layer_3d.1} parent=11 // pred_check_branch
          %172 = sbr.rel (%p170) target = $region20
        $region19: #{transition_layer_3d.1} parent=11 // pred_region
          _
        $region20: #{transition_layer_3d.1} parent=11 // pred_fallthru
          _
        // Predicated region
        $region21: #{transition_layer_3d.1} parent=11 // pred_check
          %p173 = pneg %p122
        $region22: #{transition_layer_3d.1} parent=11 // pred_check_branch
          %175 = sbr.rel (%p173) target = $region24
        $region23: #{transition_layer_3d.1} parent=11 // pred_region
          _
        $region24: #{transition_layer_3d.1} parent=11 // pred_fallthru
          _
      $region12: #{transition_layer_3d.1} parent=5 // pred_fallthru
        _
      %p176 = scmp.lt.s32.totalorder %s10, 4
      // Predicated region
      $region25: #{transition_layer_3d.1} parent=5 // pred_check
        %p177 = pneg %p176
      $region26: #{transition_layer_3d.1} parent=5 // pred_check_branch
        %179 = sbr.rel (%p177) target = $region28
      $region27: #{transition_layer_3d.1} parent=5 // pred_region
        // Predicated region
        $region29: #{transition_layer_3d.1} parent=27 // pred_check
          %p180 = pneg %p53
        $region30: #{transition_layer_3d.1} parent=27 // pred_check_branch
          %182 = sbr.rel (%p180) target = $region32
        $region31: #{transition_layer_3d.1} parent=27 // pred_region
          %s183 = sand.u32 %s43, 1
          %s184 = sand.u32 %s43, 1
          %s185 = smul.addr %s184, 128
          %s186 = scalar_lea.vmem [#allocation2], %s185
          %s187 = smul.u32 2, %s18
          %s188 = smul.u32 2, %s19
          %s189 = smul.addr %s187, 2
          %s190 = sadd.s32 %s188, %s189
          %s191 = smul.addr %s17, 32
          %s192 = sadd.s32 %s190, %s191
          %s193 = smul.addr %s192, 8
          %s194 = scalar_lea.vmem %s0, %s193
          // Predicated region
          $region33: #{transition_layer_3d.1} parent=31 // pred_check
            _
          $region34: #{transition_layer_3d.1} parent=31 // pred_check_branch
            %196 = sbr.rel (0) target = $region36
          $region35: #{transition_layer_3d.1} parent=31 // pred_region
            // Predicated region
            $region37: #{transition_layer_3d.1} parent=35 // pred_check
              _
            $region38: #{transition_layer_3d.1} parent=35 // pred_check_branch
              %198 = sbr.rel (0) target = $region40
            $region39: #{transition_layer_3d.1} parent=35 // pred_region
              // Predicated region
              $region52: #{transition_layer_3d.1} parent=39 // pred_check
                _
              $region53: #{transition_layer_3d.1} parent=39 // pred_check_branch
                %243 = sbr.rel (0) target = $region55
              $region54: #{transition_layer_3d.1} parent=39 // pred_region
                loop: start=0, step=1, limit=1
                $region56: #{transition_layer_3d.1} parent=54 // loop_pre_header
                  _
                $region57: #{transition_layer_3d.1} parent=54 // loop_header
                  %s245 = sphi 0, %s249
                  %p246 = scmp.ge.s32.totalorder %s245, 1
                  %s250 = sphi %s194, %s194
                  %s251 = sphi %s186, %s186
                $region58: #{transition_layer_3d.1} parent=54 // loop_header_branch
                  %248 = sbr.rel (%p246) target = $region62
                $region59: #{transition_layer_3d.1} parent=54 // loop_body
                  %v252 = vld [vmem:[%s250] sm:$0xff]
                  %253 = vst [vmem:[%s251] sm:$0xff] %v252
                  %v254 = vld [vmem:[%s250 + $0x8] sm:$0xff]
                  %255 = vst [vmem:[%s251 + $0x8] sm:$0xff] %v254
                  %v256 = vld [vmem:[%s250 + $0x10] sm:$0xff]
                  %257 = vst [vmem:[%s251 + $0x10] sm:$0xff] %v256
                  %v258 = vld [vmem:[%s250 + $0x18] sm:$0xff]
                  %259 = vst [vmem:[%s251 + $0x18] sm:$0xff] %v258
                  %v260 = vld [vmem:[%s250 + $0x40] sm:$0xff]
                  %261 = vst [vmem:[%s251 + $0x20] sm:$0xff] %v260
                  %v262 = vld [vmem:[%s250 + $0x48] sm:$0xff]
                  %263 = vst [vmem:[%s251 + $0x28] sm:$0xff] %v262
                  %v264 = vld [vmem:[%s250 + $0x50] sm:$0xff]
                  %265 = vst [vmem:[%s251 + $0x30] sm:$0xff] %v264
                  %v266 = vld [vmem:[%s250 + $0x58] sm:$0xff]
                  %267 = vst [vmem:[%s251 + $0x38] sm:$0xff] %v266
                  %v268 = vld [vmem:[%s250 + $0x80] sm:$0xff]
                  %269 = vst [vmem:[%s251 + $0x40] sm:$0xff] %v268
                  %v270 = vld [vmem:[%s250 + $0x88] sm:$0xff]
                  %271 = vst [vmem:[%s251 + $0x48] sm:$0xff] %v270
                  %v272 = vld [vmem:[%s250 + $0x90] sm:$0xff]
                  %273 = vst [vmem:[%s251 + $0x50] sm:$0xff] %v272
                  %v274 = vld [vmem:[%s250 + $0x98] sm:$0xff]
                  %275 = vst [vmem:[%s251 + $0x58] sm:$0xff] %v274
                  %v276 = vld [vmem:[%s250 + $0xc0] sm:$0xff]
                  %277 = vst [vmem:[%s251 + $0x60] sm:$0xff] %v276
                  %v278 = vld [vmem:[%s250 + $0xc8] sm:$0xff]
                  %279 = vst [vmem:[%s251 + $0x68] sm:$0xff] %v278
                  %v280 = vld [vmem:[%s250 + $0xd0] sm:$0xff]
                  %281 = vst [vmem:[%s251 + $0x70] sm:$0xff] %v280
                  %v282 = vld [vmem:[%s250 + $0xd8] sm:$0xff]
                  %283 = vst [vmem:[%s251 + $0x78] sm:$0xff] %v282
                $region60: #{transition_layer_3d.1} parent=54 // loop_footer
                  %s249 = sadd.s32 1, %s245
                $region61: #{transition_layer_3d.1} parent=54 // loop_footer_branch
                  %244 = sbr.rel target = $region57
                $region62: #{transition_layer_3d.1} parent=54 // loop_exit
                  _
              $region55: #{transition_layer_3d.1} parent=39 // pred_fallthru
                _
              // Predicated region
              $region63: #{transition_layer_3d.1} parent=39 // pred_check
                _
              $region64: #{transition_layer_3d.1} parent=39 // pred_check_branch
                %285 = sbr.rel target = $region66
              $region65: #{transition_layer_3d.1} parent=39 // pred_region
                _
              $region66: #{transition_layer_3d.1} parent=39 // pred_fallthru
                _
            $region40: #{transition_layer_3d.1} parent=35 // pred_fallthru
              _
            // Predicated region
            $region41: #{transition_layer_3d.1} parent=35 // pred_check
              _
            $region42: #{transition_layer_3d.1} parent=35 // pred_check_branch
              %200 = sbr.rel target = $region44
            $region43: #{transition_layer_3d.1} parent=35 // pred_region
              loop: start=0, step=1, limit=1
              $region45: #{transition_layer_3d.1} parent=43 // loop_pre_header
                _
              $region46: #{transition_layer_3d.1} parent=43 // loop_header
                %s203 = sphi 0, %s207
                %p204 = scmp.ge.s32.totalorder %s203, 1
                %s208 = sphi %s194, %s194
                %s209 = sphi %s186, %s186
              $region47: #{transition_layer_3d.1} parent=43 // loop_header_branch
                %206 = sbr.rel (%p204) target = $region51
              $region48: #{transition_layer_3d.1} parent=43 // loop_body
                %v210 = vld [vmem:[%s208] sm:$0xff]
                %211 = vst [vmem:[%s209] sm:$0xff] %v210
                %v212 = vld [vmem:[%s208 + $0x8] sm:$0xff]
                %213 = vst [vmem:[%s209 + $0x8] sm:$0xff] %v212
                %v214 = vld [vmem:[%s208 + $0x10] sm:$0xff]
                %215 = vst [vmem:[%s209 + $0x10] sm:$0xff] %v214
                %v216 = vld [vmem:[%s208 + $0x18] sm:$0xff]
                %217 = vst [vmem:[%s209 + $0x18] sm:$0xff] %v216
                %v218 = vld [vmem:[%s208 + $0x40] sm:$0xff]
                %219 = vst [vmem:[%s209 + $0x20] sm:$0xff] %v218
                %v220 = vld [vmem:[%s208 + $0x48] sm:$0xff]
                %221 = vst [vmem:[%s209 + $0x28] sm:$0xff] %v220
                %v222 = vld [vmem:[%s208 + $0x50] sm:$0xff]
                %223 = vst [vmem:[%s209 + $0x30] sm:$0xff] %v222
                %v224 = vld [vmem:[%s208 + $0x58] sm:$0xff]
                %225 = vst [vmem:[%s209 + $0x38] sm:$0xff] %v224
                %v226 = vld [vmem:[%s208 + $0x80] sm:$0xff]
                %227 = vst [vmem:[%s209 + $0x40] sm:$0xff] %v226
                %v228 = vld [vmem:[%s208 + $0x88] sm:$0xff]
                %229 = vst [vmem:[%s209 + $0x48] sm:$0xff] %v228
                %v230 = vld [vmem:[%s208 + $0x90] sm:$0xff]
                %231 = vst [vmem:[%s209 + $0x50] sm:$0xff] %v230
                %v232 = vld [vmem:[%s208 + $0x98] sm:$0xff]
                %233 = vst [vmem:[%s209 + $0x58] sm:$0xff] %v232
                %v234 = vld [vmem:[%s208 + $0xc0] sm:$0xff]
                %235 = vst [vmem:[%s209 + $0x60] sm:$0xff] %v234
                %v236 = vld [vmem:[%s208 + $0xc8] sm:$0xff]
                %237 = vst [vmem:[%s209 + $0x68] sm:$0xff] %v236
                %v238 = vld [vmem:[%s208 + $0xd0] sm:$0xff]
                %239 = vst [vmem:[%s209 + $0x70] sm:$0xff] %v238
                %v240 = vld [vmem:[%s208 + $0xd8] sm:$0xff]
                %241 = vst [vmem:[%s209 + $0x78] sm:$0xff] %v240
              $region49: #{transition_layer_3d.1} parent=43 // loop_footer
                %s207 = sadd.s32 1, %s203
              $region50: #{transition_layer_3d.1} parent=43 // loop_footer_branch
                %202 = sbr.rel target = $region46
              $region51: #{transition_layer_3d.1} parent=43 // loop_exit
                _
            $region44: #{transition_layer_3d.1} parent=35 // pred_fallthru
              _
          $region36: #{transition_layer_3d.1} parent=31 // pred_fallthru
            _
          %286 = vnop
        $region32: #{transition_layer_3d.1} parent=27 // pred_fallthru
          _
      $region28: #{transition_layer_3d.1} parent=5 // pred_fallthru
        _
      %p287 = scmp.le.s32.totalorder 1, %s10
      %p288 = scmp.lt.s32.totalorder %s10, 5
      %p289 = pnand %p287, %p288
      %p290 = pneg %p289
      // Predicated region
      $region67: #{transition_layer_3d.1} parent=5 // pred_check
        _
      $region68: #{transition_layer_3d.1} parent=5 // pred_check_branch
        %292 = sbr.rel (%p289) target = $region70
      $region69: #{transition_layer_3d.1} parent=5 // pred_region
        %s293 = ssub.s32 %s10, 1
        %s294 = sand.u32 %s46, 1
        %s295 = sand.u32 %s46, 1
        %s296 = smul.addr %s295, 128
        %s297 = scalar_lea.vmem [#allocation2], %s296
        // Predicated region
        $region71: #{transition_layer_3d.1} parent=69 // pred_check
          %p298 = pneg %p59
        $region72: #{transition_layer_3d.1} parent=69 // pred_check_branch
          %300 = sbr.rel (%p298) target = $region74
        $region73: #{transition_layer_3d.1} parent=69 // pred_region
          _
        $region74: #{transition_layer_3d.1} parent=69 // pred_fallthru
          _
        %s301 = sand.u32 %s46, 1
        %s302 = sand.u32 %s46, 1
        %s303 = smul.addr %s302, 128
        %s304 = scalar_lea.vmem [#allocation2], %s303
        %p305 = pneg %p59
        %p306 = pneg %p56
        %p307 = pneg %p80
        %p308 = pneg %p77
        %p309 = pneg %p101
        %p310 = pneg %p98
        %p311 = pneg %p122
        %p312 = pneg %p119
        %p313 = pneg %p152
        %p314 = pneg %p149
        %s315 = smul.u32 2, %s22
        %p316 = scmp.lt.s32.totalorder %s20, 1
        %s317 = scalar_select %p316, %s20, 1
        %p318 = scmp.lt.s32.totalorder %s21, 1
        %s319 = scalar_select %p318, %s21, 1
        %p320 = scmp.lt.s32.totalorder %s315, 1
        %s321 = scalar_select %p320, %s315, 1
        %s322 = smul.addr %s319, 2
        %s323 = sadd.s32 %s321, %s322
        %s324 = smul.addr %s317, 4
        %s325 = sadd.s32 %s323, %s324
        %s326 = smul.addr %s325, 8
        %s327 = scalar_lea.vmem %s4, %s326
        %s328 = smul.u32 2, %s21
        %s329 = smul.u32 2, %s22
        %s330 = smul.u32 2, %s22
        %p331 = scmp.lt.s32.totalorder %s20, 1
        %s332 = scalar_select %p331, %s20, 1
        %p333 = scmp.lt.s32.totalorder %s21, 1
        %s334 = scalar_select %p333, %s21, 1
        %p335 = scmp.lt.s32.totalorder %s330, 1
        %s336 = scalar_select %p335, %s330, 1
        %s337 = smul.addr %s334, 2
        %s338 = sadd.s32 %s336, %s337
        %s339 = smul.addr %s332, 4
        %s340 = sadd.s32 %s338, %s339
        %s341 = smul.addr %s340, 8
        %s342 = scalar_lea.vmem %s4, %s341
        %s343 = smul.u32 2, %s22
        %v344 = vld [vmem:[%s297] sm:$0xff]
        %v345 = vld [vmem:[%s297 + $0x8] sm:$0xff]
        %v346 = vld [vmem:[%s297 + $0x10] sm:$0xff]
        %v347 = vld [vmem:[%s297 + $0x18] sm:$0xff]
        %v348 = vld [vmem:[%s297 + $0x20] sm:$0xff]
        %v349 = vld [vmem:[%s297 + $0x28] sm:$0xff]
        %v350 = vld [vmem:[%s297 + $0x30] sm:$0xff]
        %v351 = vld [vmem:[%s297 + $0x38] sm:$0xff]
        %v352 = vld [vmem:[%s297 + $0x40] sm:$0xff]
        %v353 = vld [vmem:[%s297 + $0x48] sm:$0xff]
        %v354 = vld [vmem:[%s297 + $0x50] sm:$0xff]
        %v355 = vld [vmem:[%s297 + $0x58] sm:$0xff]
        %v356 = vld [vmem:[%s297 + $0x60] sm:$0xff]
        %v357 = vld [vmem:[%s297 + $0x68] sm:$0xff]
        %v358 = vld [vmem:[%s297 + $0x70] sm:$0xff]
        %v359 = vld [vmem:[%s297 + $0x78] sm:$0xff]
        %v360 = vld [vmem:[%s1] sm:$0x1]
        %v361 = vld [vmem:[%s2] sm:$0x1]
        %v363 = vlaneseq
        %v364 = vshrl.u32 %v363, 7
        %v365 = vsub.s32 0, %v364
        %v366 = vrot.slane %v360, %v365
        %v368 = vmul.f32 %v344, %v366
        %v369 = vmul.f32 %v345, %v366
        %v370 = vmul.f32 %v346, %v366
        %v371 = vmul.f32 %v347, %v366
        %v372 = vmul.f32 %v348, %v366
        %v373 = vmul.f32 %v349, %v366
        %v374 = vmul.f32 %v350, %v366
        %v375 = vmul.f32 %v351, %v366
        %v376 = vmul.f32 %v352, %v366
        %v377 = vmul.f32 %v353, %v366
        %v378 = vmul.f32 %v354, %v366
        %v379 = vmul.f32 %v355, %v366
        %v380 = vmul.f32 %v356, %v366
        %v381 = vmul.f32 %v357, %v366
        %v382 = vmul.f32 %v358, %v366
        %v383 = vmul.f32 %v359, %v366
        %v385 = vlaneseq
        %v386 = vshrl.u32 %v385, 7
        %v387 = vsub.s32 0, %v386
        %v388 = vrot.slane %v361, %v387
        %v390 = vadd.f32 %v368, %v388
        %v391 = vadd.f32 %v369, %v388
        %v392 = vadd.f32 %v370, %v388
        %v393 = vadd.f32 %v371, %v388
        %v394 = vadd.f32 %v372, %v388
        %v395 = vadd.f32 %v373, %v388
        %v396 = vadd.f32 %v374, %v388
        %v397 = vadd.f32 %v375, %v388
        %v398 = vadd.f32 %v376, %v388
        %v399 = vadd.f32 %v377, %v388
        %v400 = vadd.f32 %v378, %v388
        %v401 = vadd.f32 %v379, %v388
        %v402 = vadd.f32 %v380, %v388
        %v403 = vadd.f32 %v381, %v388
        %v404 = vadd.f32 %v382, %v388
        %v405 = vadd.f32 %v383, %v388
        %v406 = vmax.f32 %v390, 0.0
        %v407 = vmax.f32 %v391, 0.0
        %v408 = vmax.f32 %v392, 0.0
        %v409 = vmax.f32 %v393, 0.0
        %v410 = vmax.f32 %v394, 0.0
        %v411 = vmax.f32 %v395, 0.0
        %v412 = vmax.f32 %v396, 0.0
        %v413 = vmax.f32 %v397, 0.0
        %v414 = vmax.f32 %v398, 0.0
        %v415 = vmax.f32 %v399, 0.0
        %v416 = vmax.f32 %v400, 0.0
        %v417 = vmax.f32 %v401, 0.0
        %v418 = vmax.f32 %v402, 0.0
        %v419 = vmax.f32 %v403, 0.0
        %v420 = vmax.f32 %v404, 0.0
        %v421 = vmax.f32 %v405, 0.0
        %vm422 = vcmask 64512
        %v423 = vsel %vm422, %v406, 0.0
        %v424 = vsel %vm422, %v408, 0.0
        %v425 = vadd.f32 %v423, %v424
        %v426 = vsel %vm422, %v410, 0.0
        %v427 = vadd.f32 %v425, %v426
        %v428 = vsel %vm422, %v412, 0.0
        %v429 = vadd.f32 %v427, %v428
        %v430 = vsel %vm422, %v414, 0.0
        %v431 = vadd.f32 %v429, %v430
        %v432 = vsel %vm422, %v416, 0.0
        %v433 = vadd.f32 %v431, %v432
        %v434 = vsel %vm422, %v418, 0.0
        %v435 = vadd.f32 %v433, %v434
        %v436 = vsel %vm422, %v420, 0.0
        %v437 = vadd.f32 %v435, %v436
        %v438 = vsel %vm422, %v407, 0.0
        %v439 = vsel %vm422, %v409, 0.0
        %v440 = vadd.f32 %v438, %v439
        %v441 = vsel %vm422, %v411, 0.0
        %v442 = vadd.f32 %v440, %v441
        %v443 = vsel %vm422, %v413, 0.0
        %v444 = vadd.f32 %v442, %v443
        %v445 = vsel %vm422, %v415, 0.0
        %v446 = vadd.f32 %v444, %v445
        %v447 = vsel %vm422, %v417, 0.0
        %v448 = vadd.f32 %v446, %v447
        %v449 = vsel %vm422, %v419, 0.0
        %v450 = vadd.f32 %v448, %v449
        %v451 = vsel %vm422, %v421, 0.0
        %v452 = vadd.f32 %v450, %v451
        %v453 = vld [vmem:[%s3] sm:$0xff]
        %v455 = vsel %vm422, %v437, 0
        %v458 = vsel %vm422, %v452, 0
        %460 = vmatprep.subr.mxu0 0.0
        %461 = vmatpush1.msra.mxu0 %v453
        %462 = vmatprep.subr.mxu0 0.0
        %463 = vmatpush1.msra.mxu0 0.0
        %464 = vmatprep.subr.mxu0 0.0
        %465 = vmatpush1.msra.mxu0 0.0
        %466 = vmatprep.subr.mxu0 0.0
        %467 = vmatpush1.msra.mxu0 0.0
        %468 = vmatprep.subr.mxu0 0.0
        %469 = vmatpush1.msra.mxu0 0.0
        %470 = vmatprep.subr.mxu0 0.0
        %471 = vmatpush1.msra.mxu0 0.0
        %472 = vmatprep.subr.mxu0 0.0
        %473 = vmatpush1.msra.mxu0 0.0
        %474 = vmatprep.subr.mxu0 0.0
        %475 = vmatpush1.msra.mxu0 0.0
        %476 = vmatprep.subr.mxu0 0.0
        %477 = vmatpush1.msra.mxu0 0.0
        %478 = vmatprep.subr.mxu0 0.0
        %479 = vmatpush1.msra.mxu0 0.0
        %480 = vmatprep.subr.mxu0 0.0
        %481 = vmatpush1.msra.mxu0 0.0
        %482 = vmatprep.subr.mxu0 0.0
        %483 = vmatpush1.msra.mxu0 0.0
        %484 = vmatprep.subr.mxu0 0.0
        %485 = vmatpush1.msra.mxu0 0.0
        %486 = vmatprep.subr.mxu0 0.0
        %487 = vmatpush1.msra.mxu0 0.0
        %488 = vmatprep.subr.mxu0 0.0
        %489 = vmatpush1.msra.mxu0 0.0
        %490 = vmatprep.subr.mxu0 0.0
        %491 = vmatpush1.msra.mxu0 0.0
        %492 = vmatprep.subr.mxu0 0.0
        %493 = vmatpush1.msra.mxu0 0.0
        %494 = vmatprep.subr.mxu0 0.0
        %495 = vmatpush1.msra.mxu0 0.0
        %496 = vmatprep.subr.mxu0 0.0
        %497 = vmatpush1.msra.mxu0 0.0
        %498 = vmatprep.subr.mxu0 0.0
        %499 = vmatpush1.msra.mxu0 0.0
        %500 = vmatprep.subr.mxu0 0.0
        %501 = vmatpush1.msra.mxu0 0.0
        %502 = vmatprep.subr.mxu0 0.0
        %503 = vmatpush1.msra.mxu0 0.0
        %504 = vmatprep.subr.mxu0 0.0
        %505 = vmatpush1.msra.mxu0 0.0
        %506 = vmatprep.subr.mxu0 0.0
        %507 = vmatpush1.msra.mxu0 0.0
        %508 = vmatprep.subr.mxu0 0.0
        %509 = vmatpush1.msra.mxu0 0.0
        %510 = vmatprep.subr.mxu0 0.0
        %511 = vmatpush1.msra.mxu0 0.0
        %512 = vmatprep.subr.mxu0 0.0
        %513 = vmatpush1.msra.mxu0 0.0
        %514 = vmatprep.subr.mxu0 0.0
        %515 = vmatpush1.msra.mxu0 0.0
        %516 = vmatprep.subr.mxu0 0.0
        %517 = vmatpush1.msra.mxu0 0.0
        %518 = vmatprep.subr.mxu0 0.0
        %519 = vmatpush1.msra.mxu0 0.0
        %520 = vmatprep.subr.mxu0 0.0
        %521 = vmatpush1.msra.mxu0 0.0
        %522 = vmatprep.subr.mxu0 0.0
        %523 = vmatpush1.msra.mxu0 0.0
        %524 = vmatprep.mubr.f32.mxu0 0.0
        %525 = vmatmul.mubr.f32.gmra.mrb[0].mxu0 %v455
        %v526 = vpop.f32.mrb[0].mxu0
        %v527 = vadd.f32 0.0, %v526
        %v528 = vpop.f32.mrb[0].mxu0
        %529 = vmatprep.mubr.f32.mxu0 0.0
        %530 = vmatmul.mubr.f32.gmra.mrb[0].mxu0 %v458
        %v531 = vpop.f32.mrb[0].mxu0
        %v532 = vadd.f32 0.0, %v531
        %v533 = vpop.f32.mrb[0].mxu0
        %534 = vdwg.mxu0
        %vm535 = vcmask 31744
        %536 = vst.msk [vmem:[%s342] sm:$0xff] %vm535, %v527
        %537 = vst.msk [vmem:[%s342 + $0x8] sm:$0xff] %vm535, %v532
        %s538 = smul.u32 2, %s22
        %p539 = scmp.lt.s32.totalorder %s20, 1
        %s540 = scalar_select %p539, %s20, 1
        %p541 = scmp.lt.s32.totalorder %s21, 1
        %s542 = scalar_select %p541, %s21, 1
        %p543 = scmp.lt.s32.totalorder %s538, 1
        %s544 = scalar_select %p543, %s538, 1
        %s545 = smul.addr %s542, 2
        %s546 = sadd.s32 %s544, %s545
        %s547 = smul.addr %s540, 4
        %s548 = sadd.s32 %s546, %s547
        %s549 = smul.addr %s548, 8
        %s550 = scalar_lea.vmem %s4, %s549
        // Predicated region
        $region75: #{transition_layer_3d.1} parent=69 // pred_check
          %p551 = pneg %p149
        $region76: #{transition_layer_3d.1} parent=69 // pred_check_branch
          %553 = sbr.rel (%p551) target = $region78
        $region77: #{transition_layer_3d.1} parent=69 // pred_region
          %s554 = smul.u32 2, %s22
        $region78: #{transition_layer_3d.1} parent=69 // pred_fallthru
          _
      $region70: #{transition_layer_3d.1} parent=5 // pred_fallthru
        _
      %p555 = scmp.le.s32.totalorder 2, %s10
      // Predicated region
      $region79: #{transition_layer_3d.1} parent=5 // pred_check
        %p556 = pneg %p555
      $region80: #{transition_layer_3d.1} parent=5 // pred_check_branch
        %558 = sbr.rel (%p556) target = $region82
      $region81: #{transition_layer_3d.1} parent=5 // pred_region
        %s559 = ssub.s32 %s10, 2
        // Predicated region
        $region83: #{transition_layer_3d.1} parent=81 // pred_check
          %p560 = pneg %p155
        $region84: #{transition_layer_3d.1} parent=81 // pred_check_branch
          %562 = sbr.rel (%p560) target = $region86
        $region85: #{transition_layer_3d.1} parent=81 // pred_region
          %s563 = smul.u32 2, %s25
          %p564 = scmp.lt.s32.totalorder %s23, 1
          %s565 = scalar_select %p564, %s23, 1
          %p566 = scmp.lt.s32.totalorder %s24, 1
          %s567 = scalar_select %p566, %s24, 1
          %p568 = scmp.lt.s32.totalorder %s563, 1
          %s569 = scalar_select %p568, %s563, 1
          %s570 = smul.addr %s567, 2
          %s571 = sadd.s32 %s569, %s570
          %s572 = smul.addr %s565, 4
          %s573 = sadd.s32 %s571, %s572
          %s574 = smul.addr %s573, 8
          %s575 = scalar_lea.vmem %s4, %s574
        $region86: #{transition_layer_3d.1} parent=81 // pred_fallthru
          _
      $region82: #{transition_layer_3d.1} parent=5 // pred_fallthru
        _
    $region6: #{transition_layer_3d.1} parent=1 // loop_footer
      %s14 = sadd.s32 1, %s10
    $region7: #{transition_layer_3d.1} parent=1 // loop_footer_branch
      %9 = sbr.rel target = $region3
    $region8: #{transition_layer_3d.1} parent=1 // loop_exit
      _

</llo_original>
